<compile_context>
chip_gen: v7x
topology: tpu7x:2x2x1
jax: 0.10.0
libtpu: 0.0.40
codegen_flags: <defaults>
</compile_context>

<pallas_src>
import functools

import jax
import jax.numpy as jnp
from jax import lax
from jax.experimental import pallas as pl
from jax.experimental.pallas import tpu as pltpu

ALPHA = 1                          # module default
EPSILON = 1e-8                     # module default
NORM_CONST = 256.0 * 256.0 * 3.0   # hardcoded in the PyTorch module's forward
LANES = 128
CHUNK_ROWS = 64                    # per-loop-step sub-block: (64, 128) f32 = 8 vregs/temp
MAX_TILE_ROWS = 2048               # per-grid-step block: (2, 2048, 128) f32 = 2 MiB


def _round_up(x, m):
    return -(-x // m) * m


def _fold_rows(x, combine):
    """(CHUNK_ROWS, 128) -> (8, 128) by vreg-wise combine of 8-row groups (pure VPU)."""
    acc = x[0:8, :]
    for r in range(8, CHUNK_ROWS, 8):
        acc = combine(acc, x[r:r + 8, :])
    return acc


def _ffl_partial_kernel(d_ref, o_ref, *, n_valid, tile_rows, alpha, epsilon,
                        first_ragged, num_tiles):
    """Per-tile partial reduction.

    d_ref : (2, tile_rows, 128) f32 -- [Re(diff); Im(diff)], zero-padded tail.
    o_ref : (32, 128) f32           -- rows 0:8   per-lane sum(d^2)
                                       rows 8:16  per-lane sum(d^2 * w)
                                       rows 16:24 per-lane min(w)  (+inf on masked lanes)
                                       rows 24:32 per-lane max(w)  (0 on masked lanes)
                                       cross-lane combine happens in the XLA epilogue.
    """
    n_chunks = tile_rows // CHUNK_ROWS
    tile_elems = tile_rows * LANES

    def tile_body(ragged):
        if ragged:
            flat0 = (lax.broadcasted_iota(jnp.int32, (CHUNK_ROWS, LANES), 0) * LANES
                     + lax.broadcasted_iota(jnp.int32, (CHUNK_ROWS, LANES), 1))
            tile_start = pl.program_id(0) * tile_elems

        def chunk(c, carry):
            acc_s, acc_sw, acc_min, acc_max = carry
            start = pl.multiple_of(c * CHUNK_ROWS, CHUNK_ROWS)
            sl = pl.ds(start, CHUNK_ROWS)
            dr = d_ref[0, sl, :]
            di = d_ref[1, sl, :]
            # Squared distance used directly; exactly one sqrt per element.
            s = dr * dr + di * di + epsilon
            if ragged:
                # Padding -> s = 0 -> d = w = 0: contributes 0 to both sums and never
                # wins the max (true max >= sqrt(eps) > 0); only the min needs +inf.
                valid = flat0 < (n_valid - tile_start - c * (CHUNK_ROWS * LANES))
                s = jnp.where(valid, s, 0.0)
            w = jnp.sqrt(s)
            if alpha != 1:           # static python branch; module default alpha == 1
                w = w ** alpha
            acc_s = acc_s + _fold_rows(s, jnp.add)
            acc_sw = acc_sw + _fold_rows(s * w, jnp.add)
            w_for_min = jnp.where(valid, w, jnp.inf) if ragged else w
            acc_min = jnp.minimum(acc_min, _fold_rows(w_for_min, jnp.minimum))
            acc_max = jnp.maximum(acc_max, _fold_rows(w, jnp.maximum))
            return acc_s, acc_sw, acc_min, acc_max

        init = (jnp.zeros((8, LANES), jnp.float32),
                jnp.zeros((8, LANES), jnp.float32),
                jnp.full((8, LANES), jnp.inf, dtype=jnp.float32),
                jnp.zeros((8, LANES), jnp.float32))
        acc_s, acc_sw, acc_min, acc_max = lax.fori_loop(
            0, n_chunks, chunk, init, unroll=True)
        o_ref[0:8, :] = acc_s
        o_ref[8:16, :] = acc_sw
        o_ref[16:24, :] = acc_min
        o_ref[24:32, :] = acc_max

    if first_ragged >= num_tiles:          # no padded tail anywhere -> clean path only
        tile_body(ragged=False)
    elif first_ragged == 0:                # single tiny tile -> everything ragged
        tile_body(ragged=True)
    else:                                  # mask work only on the ragged tail tiles
        @pl.when(pl.program_id(0) < first_ragged)
        def _():
            tile_body(ragged=False)

        @pl.when(pl.program_id(0) >= first_ragged)
        def _():
            tile_body(ragged=True)


def focal_loss(fake, real, alpha=ALPHA, epsilon=EPSILON):
    # TODO(synk): torch.fft.rfftn has no Pallas equivalent; the FFT stays in XLA.
    fake_fft = jnp.fft.rfftn(fake.astype(jnp.float32), norm="ortho")
    real_fft = jnp.fft.rfftn(real.astype(jnp.float32), norm="ortho")

    # TODO(synk): the reviewed "in-kernel complex diff" needs a free complex64->f32 view,
    # which XLA/JAX does not provide, so the fused diff slab stays the minimal-traffic layout.
    diff = real_fft - fake_fft
    dr = jnp.real(diff).reshape(-1)
    di = jnp.imag(diff).reshape(-1)

    n = dr.size                                   # static number of FFT bins
    rows = -(-n // LANES)                         # ceil(n / 128)

    # Tile sizing: largest block <= MAX_TILE_ROWS rows (multiple of CHUNK_ROWS), aimed at
    # an even tile count (>= 2) whenever there is more than one tile of data (v7x megacore).
    pairs = max(1, -(-rows // (2 * MAX_TILE_ROWS)))
    tile_rows = _round_up(-(-rows // (2 * pairs)), CHUNK_ROWS)
    num_tiles = -(-rows // tile_rows)
    rows_pad = num_tiles * tile_rows
    pad = rows_pad * LANES - n
    first_ragged = n // (tile_rows * LANES)       # first tile index that touches padding

    stacked = jnp.stack(
        [jnp.pad(dr, (0, pad)), jnp.pad(di, (0, pad))], axis=0,
    ).reshape(2, rows_pad, LANES)

    kernel = functools.partial(
        _ffl_partial_kernel, n_valid=n, tile_rows=tile_rows, alpha=alpha,
        epsilon=epsilon, first_ragged=first_ragged, num_tiles=num_tiles)

    cost = pl.CostEstimate(
        flops=10 * rows_pad * LANES,
        transcendentals=rows_pad * LANES,
        bytes_accessed=(2 * rows_pad * LANES + num_tiles * 32 * LANES) * 4)

    parts = pl.pallas_call(
        kernel,
        out_shape=jax.ShapeDtypeStruct((num_tiles * 32, LANES), jnp.float32),
        grid=(num_tiles,),
        in_specs=[pl.BlockSpec((2, tile_rows, LANES), lambda i: (0, i, 0))],
        out_specs=pl.BlockSpec((32, LANES), lambda i: (i, 0)),
        compiler_params=pltpu.CompilerParams(
            dimension_semantics=("parallel",)),   # megacore split on v7x
        cost_estimate=cost,
    )(stacked)

    parts = parts.reshape(num_tiles, 4, 8, LANES)
    sum_s = jnp.sum(parts[:, 0])
    sum_sw = jnp.sum(parts[:, 1])
    w_min = jnp.min(parts[:, 2])
    w_max = jnp.max(parts[:, 3])

    # sum(d^2 * (w - w_min) / (w_max - w_min)) / NORM, folded to 4 scalars.
    # NOTE: w_max == w_min (fake == real) yields inf/nan exactly like the reference.
    return (sum_sw - w_min * sum_s) / (w_max - w_min) * (1.0 / NORM_CONST)


def _reference(fake, real, alpha=ALPHA, epsilon=EPSILON):
    fake_fft = jnp.fft.rfftn(fake.astype(jnp.float32), norm="ortho")
    real_fft = jnp.fft.rfftn(real.astype(jnp.float32), norm="ortho")
    x_dist = (jnp.real(real_fft) - jnp.real(fake_fft)) ** 2
    y_dist = (jnp.imag(real_fft) - jnp.imag(fake_fft)) ** 2
    dist = jnp.sqrt(x_dist + y_dist + epsilon)
    sq = dist ** 2
    w = dist ** alpha
    nw = (w - jnp.min(w)) / (jnp.max(w) - jnp.min(w))
    return jnp.sum(sq * nw) / NORM_CONST


if __name__ == "__main__":
    key = jax.random.PRNGKey(0)
    k1, k2 = jax.random.split(key)
    # NCHW, small shapes consistent with an image loss module.
    fake = jax.random.normal(k1, (2, 4, 16, 16), dtype=jnp.float32)
    real = jax.random.normal(k2, (2, 4, 16, 16), dtype=jnp.float32)

    loss = jax.block_until_ready(jax.jit(focal_loss)(fake, real))
    ref = jax.block_until_ready(_reference(fake, real))

    assert jnp.allclose(loss, ref, rtol=1e-5, atol=1e-6), (loss, ref)
    print("KERNEL_OK")
</pallas_src>

<mosaic_0001>
module attributes {stable_mosaic.version = 11 : i64} {
  func.func @_ffl_partial_kernel(%arg0: i32, %arg1: memref<2x64x128xf32, #tpu.memory_space<vmem>>, %arg2: memref<32x128xf32, #tpu.memory_space<vmem>>) attributes {dimension_semantics = [#tpu.dimension_semantics<parallel>], iteration_bounds = array<i64: 1>, scalar_prefetch = 0 : i64, scratch_operands = 0 : i64, tpu.core_type = #tpu.core_type<tc>, window_params = [{transform_indices = @transform_0, window_bounds = array<i64: 2, 64, 128>}, {transform_indices = @transform_1, window_bounds = array<i64: 32, 128>}]} {
    %0 = tpu.iota {dimensions = array<i32: 0>} : vector<64x128xi32>
    %c128_i32 = arith.constant 128 : i32
    %1 = vector.broadcast %c128_i32 : i32 to vector<64x128xi32>
    %2 = arith.muli %0, %1 : vector<64x128xi32>
    %3 = tpu.iota {dimensions = array<i32: 1>} : vector<64x128xi32>
    %4 = arith.addi %2, %3 : vector<64x128xi32>
    %c8192_i32 = arith.constant 8192 : i32
    %5 = arith.muli %arg0, %c8192_i32 : i32
    %cst = arith.constant 0.000000e+00 : f32
    %6 = vector.broadcast %cst : f32 to vector<8x128xf32>
    %cst_0 = arith.constant 0.000000e+00 : f32
    %7 = vector.broadcast %cst_0 : f32 to vector<8x128xf32>
    %cst_1 = arith.constant 0x7F800000 : f32
    %8 = vector.broadcast %cst_1 : f32 to vector<8x128xf32>
    %cst_2 = arith.constant 0.000000e+00 : f32
    %9 = vector.broadcast %cst_2 : f32 to vector<8x128xf32>
    %c0_i32 = arith.constant 0 : i32
    %c64_i32 = arith.constant 64 : i32
    %10 = arith.muli %c0_i32, %c64_i32 : i32
    %11 = tpu.assume_multiple %10, 64 : i32
    %c0 = arith.constant 0 : index
    %12 = arith.index_cast %11 : i32 to index
    %c0_3 = arith.constant 0 : index
    %13 = vector.load %arg1[%c0, %12, %c0_3] : memref<2x64x128xf32, #tpu.memory_space<vmem>>, vector<1x64x128xf32>
    %14 = vector.shape_cast %13 : vector<1x64x128xf32> to vector<64x128xf32>
    %c1 = arith.constant 1 : index
    %15 = arith.index_cast %11 : i32 to index
    %c0_4 = arith.constant 0 : index
    %16 = vector.load %arg1[%c1, %15, %c0_4] : memref<2x64x128xf32, #tpu.memory_space<vmem>>, vector<1x64x128xf32>
    %17 = vector.shape_cast %16 : vector<1x64x128xf32> to vector<64x128xf32>
    %18 = arith.mulf %14, %14 : vector<64x128xf32>
    %19 = arith.mulf %17, %17 : vector<64x128xf32>
    %20 = arith.addf %18, %19 : vector<64x128xf32>
    %cst_5 = arith.constant 9.99999993E-9 : f32
    %21 = vector.broadcast %cst_5 : f32 to vector<64x128xf32>
    %22 = arith.addf %20, %21 : vector<64x128xf32>
    %c1152_i32 = arith.constant 1152 : i32
    %23 = arith.subi %c1152_i32, %5 : i32
    %c8192_i32_6 = arith.constant 8192 : i32
    %24 = arith.muli %c0_i32, %c8192_i32_6 : i32
    %25 = arith.subi %23, %24 : i32
    %26 = vector.broadcast %25 : i32 to vector<64x128xi32>
    %27 = arith.cmpi slt, %4, %26 : vector<64x128xi32>
    %cst_7 = arith.constant 0.000000e+00 : f32
    %28 = vector.broadcast %cst_7 : f32 to vector<64x128xf32>
    %29 = arith.select %27, %22, %28 : vector<64x128xi1>, vector<64x128xf32>
    %30 = math.sqrt %29 : vector<64x128xf32>
    %31 = vector.extract_strided_slice %29 {offsets = [0, 0], sizes = [8, 128], strides = [1, 1]} : vector<64x128xf32> to vector<8x128xf32>
    %32 = vector.extract_strided_slice %29 {offsets = [8, 0], sizes = [8, 128], strides = [1, 1]} : vector<64x128xf32> to vector<8x128xf32>
    %33 = arith.addf %31, %32 : vector<8x128xf32>
    %34 = vector.extract_strided_slice %29 {offsets = [16, 0], sizes = [8, 128], strides = [1, 1]} : vector<64x128xf32> to vector<8x128xf32>
    %35 = arith.addf %33, %34 : vector<8x128xf32>
    %36 = vector.extract_strided_slice %29 {offsets = [24, 0], sizes = [8, 128], strides = [1, 1]} : vector<64x128xf32> to vector<8x128xf32>
    %37 = arith.addf %35, %36 : vector<8x128xf32>
    %38 = vector.extract_strided_slice %29 {offsets = [32, 0], sizes = [8, 128], strides = [1, 1]} : vector<64x128xf32> to vector<8x128xf32>
    %39 = arith.addf %37, %38 : vector<8x128xf32>
    %40 = vector.extract_strided_slice %29 {offsets = [40, 0], sizes = [8, 128], strides = [1, 1]} : vector<64x128xf32> to vector<8x128xf32>
    %41 = arith.addf %39, %40 : vector<8x128xf32>
    %42 = vector.extract_strided_slice %29 {offsets = [48, 0], sizes = [8, 128], strides = [1, 1]} : vector<64x128xf32> to vector<8x128xf32>
    %43 = arith.addf %41, %42 : vector<8x128xf32>
    %44 = vector.extract_strided_slice %29 {offsets = [56, 0], sizes = [8, 128], strides = [1, 1]} : vector<64x128xf32> to vector<8x128xf32>
    %45 = arith.addf %43, %44 : vector<8x128xf32>
    %46 = arith.addf %6, %45 : vector<8x128xf32>
    %47 = arith.mulf %29, %30 : vector<64x128xf32>
    %48 = vector.extract_strided_slice %47 {offsets = [0, 0], sizes = [8, 128], strides = [1, 1]} : vector<64x128xf32> to vector<8x128xf32>
    %49 = vector.extract_strided_slice %47 {offsets = [8, 0], sizes = [8, 128], strides = [1, 1]} : vector<64x128xf32> to vector<8x128xf32>
    %50 = arith.addf %48, %49 : vector<8x128xf32>
    %51 = vector.extract_strided_slice %47 {offsets = [16, 0], sizes = [8, 128], strides = [1, 1]} : vector<64x128xf32> to vector<8x128xf32>
    %52 = arith.addf %50, %51 : vector<8x128xf32>
    %53 = vector.extract_strided_slice %47 {offsets = [24, 0], sizes = [8, 128], strides = [1, 1]} : vector<64x128xf32> to vector<8x128xf32>
    %54 = arith.addf %52, %53 : vector<8x128xf32>
    %55 = vector.extract_strided_slice %47 {offsets = [32, 0], sizes = [8, 128], strides = [1, 1]} : vector<64x128xf32> to vector<8x128xf32>
    %56 = arith.addf %54, %55 : vector<8x128xf32>
    %57 = vector.extract_strided_slice %47 {offsets = [40, 0], sizes = [8, 128], strides = [1, 1]} : vector<64x128xf32> to vector<8x128xf32>
    %58 = arith.addf %56, %57 : vector<8x128xf32>
    %59 = vector.extract_strided_slice %47 {offsets = [48, 0], sizes = [8, 128], strides = [1, 1]} : vector<64x128xf32> to vector<8x128xf32>
    %60 = arith.addf %58, %59 : vector<8x128xf32>
    %61 = vector.extract_strided_slice %47 {offsets = [56, 0], sizes = [8, 128], strides = [1, 1]} : vector<64x128xf32> to vector<8x128xf32>
    %62 = arith.addf %60, %61 : vector<8x128xf32>
    %63 = arith.addf %7, %62 : vector<8x128xf32>
    %cst_8 = arith.constant 0x7F800000 : f32
    %64 = vector.broadcast %cst_8 : f32 to vector<64x128xf32>
    %65 = arith.select %27, %30, %64 : vector<64x128xi1>, vector<64x128xf32>
    %66 = vector.extract_strided_slice %65 {offsets = [0, 0], sizes = [8, 128], strides = [1, 1]} : vector<64x128xf32> to vector<8x128xf32>
    %67 = vector.extract_strided_slice %65 {offsets = [8, 0], sizes = [8, 128], strides = [1, 1]} : vector<64x128xf32> to vector<8x128xf32>
    %68 = arith.minimumf %66, %67 : vector<8x128xf32>
    %69 = vector.extract_strided_slice %65 {offsets = [16, 0], sizes = [8, 128], strides = [1, 1]} : vector<64x128xf32> to vector<8x128xf32>
    %70 = arith.minimumf %68, %69 : vector<8x128xf32>
    %71 = vector.extract_strided_slice %65 {offsets = [24, 0], sizes = [8, 128], strides = [1, 1]} : vector<64x128xf32> to vector<8x128xf32>
    %72 = arith.minimumf %70, %71 : vector<8x128xf32>
    %73 = vector.extract_strided_slice %65 {offsets = [32, 0], sizes = [8, 128], strides = [1, 1]} : vector<64x128xf32> to vector<8x128xf32>
    %74 = arith.minimumf %72, %73 : vector<8x128xf32>
    %75 = vector.extract_strided_slice %65 {offsets = [40, 0], sizes = [8, 128], strides = [1, 1]} : vector<64x128xf32> to vector<8x128xf32>
    %76 = arith.minimumf %74, %75 : vector<8x128xf32>
    %77 = vector.extract_strided_slice %65 {offsets = [48, 0], sizes = [8, 128], strides = [1, 1]} : vector<64x128xf32> to vector<8x128xf32>
    %78 = arith.minimumf %76, %77 : vector<8x128xf32>
    %79 = vector.extract_strided_slice %65 {offsets = [56, 0], sizes = [8, 128], strides = [1, 1]} : vector<64x128xf32> to vector<8x128xf32>
    %80 = arith.minimumf %78, %79 : vector<8x128xf32>
    %81 = arith.minimumf %8, %80 : vector<8x128xf32>
    %82 = vector.extract_strided_slice %30 {offsets = [0, 0], sizes = [8, 128], strides = [1, 1]} : vector<64x128xf32> to vector<8x128xf32>
    %83 = vector.extract_strided_slice %30 {offsets = [8, 0], sizes = [8, 128], strides = [1, 1]} : vector<64x128xf32> to vector<8x128xf32>
    %84 = arith.maximumf %82, %83 : vector<8x128xf32>
    %85 = vector.extract_strided_slice %30 {offsets = [16, 0], sizes = [8, 128], strides = [1, 1]} : vector<64x128xf32> to vector<8x128xf32>
    %86 = arith.maximumf %84, %85 : vector<8x128xf32>
    %87 = vector.extract_strided_slice %30 {offsets = [24, 0], sizes = [8, 128], strides = [1, 1]} : vector<64x128xf32> to vector<8x128xf32>
    %88 = arith.maximumf %86, %87 : vector<8x128xf32>
    %89 = vector.extract_strided_slice %30 {offsets = [32, 0], sizes = [8, 128], strides = [1, 1]} : vector<64x128xf32> to vector<8x128xf32>
    %90 = arith.maximumf %88, %89 : vector<8x128xf32>
    %91 = vector.extract_strided_slice %30 {offsets = [40, 0], sizes = [8, 128], strides = [1, 1]} : vector<64x128xf32> to vector<8x128xf32>
    %92 = arith.maximumf %90, %91 : vector<8x128xf32>
    %93 = vector.extract_strided_slice %30 {offsets = [48, 0], sizes = [8, 128], strides = [1, 1]} : vector<64x128xf32> to vector<8x128xf32>
    %94 = arith.maximumf %92, %93 : vector<8x128xf32>
    %95 = vector.extract_strided_slice %30 {offsets = [56, 0], sizes = [8, 128], strides = [1, 1]} : vector<64x128xf32> to vector<8x128xf32>
    %96 = arith.maximumf %94, %95 : vector<8x128xf32>
    %97 = arith.maximumf %9, %96 : vector<8x128xf32>
    %c1_i32 = arith.constant 1 : i32
    %c0_9 = arith.constant 0 : index
    %c0_10 = arith.constant 0 : index
    %98 = vector.load %arg2[%c0_9, %c0_10] : memref<32x128xf32, #tpu.memory_space<vmem>>, vector<8x128xf32>
    tpu.vector_store %arg2[%c0_9, %c0_10], %46 {strides = array<i32>} : memref<32x128xf32, #tpu.memory_space<vmem>>, vector<8x128xf32>,
    %c8 = arith.constant 8 : index
    %c0_11 = arith.constant 0 : index
    %99 = vector.load %arg2[%c8, %c0_11] : memref<32x128xf32, #tpu.memory_space<vmem>>, vector<8x128xf32>
    tpu.vector_store %arg2[%c8, %c0_11], %63 {strides = array<i32>} : memref<32x128xf32, #tpu.memory_space<vmem>>, vector<8x128xf32>,
    %c16 = arith.constant 16 : index
    %c0_12 = arith.constant 0 : index
    %100 = vector.load %arg2[%c16, %c0_12] : memref<32x128xf32, #tpu.memory_space<vmem>>, vector<8x128xf32>
    tpu.vector_store %arg2[%c16, %c0_12], %81 {strides = array<i32>} : memref<32x128xf32, #tpu.memory_space<vmem>>, vector<8x128xf32>,
    %c24 = arith.constant 24 : index
    %c0_13 = arith.constant 0 : index
    %101 = vector.load %arg2[%c24, %c0_13] : memref<32x128xf32, #tpu.memory_space<vmem>>, vector<8x128xf32>
    tpu.vector_store %arg2[%c24, %c0_13], %97 {strides = array<i32>} : memref<32x128xf32, #tpu.memory_space<vmem>>, vector<8x128xf32>,
    return
  }
  func.func @transform_0(%arg0: i32) -> (i32, i32, i32) {
    %c0_i32 = arith.constant 0 : i32
    %c0_i32_0 = arith.constant 0 : i32
    %c0_i32_1 = arith.constant 0 : i32
    return %c0_i32, %arg0, %c0_i32_0 : i32, i32, i32
  }
  func.func @transform_1(%arg0: i32) -> (i32, i32) {
    %c0_i32 = arith.constant 0 : i32
    %c0_i32_0 = arith.constant 0 : i32
    return %arg0, %c0_i32 : i32, i32
  }
}

</mosaic_0001>

<llo_original>
// kernel: focal_loss.1
$region0: #{focal_loss.1}
  #allocation0 [shape = 'u32[]', space=smem, size = 0x4, offset = 0x4, fixed_abs, tag = 'smem constant byte address 0x4 - core index']
  #allocation1 [shape = 'u32[144,128]{1,0:T(1,128)}', space=vmem, size = 0x12000, scoped, tag = 'internal scratch']
  %s0 = inlined_call_operand.vmem [shape: f32[2,64,128], index: 0, kind: input, shape index: {}]
  %s1 = inlined_call_operand.vmem [shape: f32[32,128], index: 1, kind: output, shape index: {}]
  %s2 = sld [smem:[#allocation0]]
  $region14: #{focal_loss.1} parent=0
    _
  %s4 = ssub.s32 1, %s2
  %s5 = scalar_select 0, %s4, %s2
  // Predicated region
  $region2: #{focal_loss.1} parent=0 // pred_check
    _
  $region3: #{focal_loss.1} parent=0 // pred_check_branch
    %7 = sbr.rel (0) target = $region5
  $region4: #{focal_loss.1} parent=0 // pred_region
    _
  $region5: #{focal_loss.1} parent=0 // pred_fallthru
    _
  %v8 = vlaneseq
  %v9 = vshrl.u32 %v8, 7
  %v10 = vadd.s32 %v9, 8
  %v11 = vadd.s32 %v9, 16
  %v12 = vadd.s32 %v9, 24
  %v13 = vadd.s32 %v9, 32
  %v14 = vadd.s32 %v9, 40
  %v15 = vadd.s32 %v9, 48
  %v16 = vadd.s32 %v9, 56
  %v17 = vmul.u32 %v9, 128
  %v18 = vmul.u32 %v10, 128
  %v19 = vmul.u32 %v11, 128
  %v20 = vmul.u32 %v12, 128
  %v21 = vmul.u32 %v13, 128
  %v22 = vmul.u32 %v14, 128
  %v23 = vmul.u32 %v15, 128
  %v24 = vmul.u32 %v16, 128
  %v25 = vlaneseq
  %v26 = vand.u32 %v25, 127
  %v27 = vadd.s32 %v17, %v26
  %v28 = vadd.s32 %v18, %v26
  %v29 = vadd.s32 %v19, %v26
  %v30 = vadd.s32 %v20, %v26
  %v31 = vadd.s32 %v21, %v26
  %v32 = vadd.s32 %v22, %v26
  %v33 = vadd.s32 %v23, %v26
  %v34 = vadd.s32 %v24, %v26
  %s35 = smul.u32 0, 8192
  %v36 = vld [vmem:[%s0] sm:$0xff]
  %v37 = vld [vmem:[%s0 + $0x8] sm:$0xff]
  %v38 = vld [vmem:[%s0 + $0x10] sm:$0xff]
  %v39 = vld [vmem:[%s0 + $0x18] sm:$0xff]
  %v40 = vld [vmem:[%s0 + $0x20] sm:$0xff]
  %v41 = vld [vmem:[%s0 + $0x28] sm:$0xff]
  %v42 = vld [vmem:[%s0 + $0x30] sm:$0xff]
  %v43 = vld [vmem:[%s0 + $0x38] sm:$0xff]
  %s44 = sadd.s32 0, 64
  %s45 = scalar_lea.vmem %s0, %s44
  %v46 = vld [vmem:[%s45] sm:$0xff]
  %v47 = vld [vmem:[%s45 + $0x8] sm:$0xff]
  %v48 = vld [vmem:[%s45 + $0x10] sm:$0xff]
  %v49 = vld [vmem:[%s45 + $0x18] sm:$0xff]
  %v50 = vld [vmem:[%s45 + $0x20] sm:$0xff]
  %v51 = vld [vmem:[%s45 + $0x28] sm:$0xff]
  %v52 = vld [vmem:[%s45 + $0x30] sm:$0xff]
  %v53 = vld [vmem:[%s45 + $0x38] sm:$0xff]
  %v54 = vmul.f32 %v36, %v36
  %v55 = vmul.f32 %v37, %v37
  %v56 = vmul.f32 %v38, %v38
  %v57 = vmul.f32 %v39, %v39
  %v58 = vmul.f32 %v40, %v40
  %v59 = vmul.f32 %v41, %v41
  %v60 = vmul.f32 %v42, %v42
  %v61 = vmul.f32 %v43, %v43
  %v62 = vmul.f32 %v46, %v46
  %v63 = vmul.f32 %v47, %v47
  %v64 = vmul.f32 %v48, %v48
  %v65 = vmul.f32 %v49, %v49
  %v66 = vmul.f32 %v50, %v50
  %v67 = vmul.f32 %v51, %v51
  %v68 = vmul.f32 %v52, %v52
  %v69 = vmul.f32 %v53, %v53
  %v70 = vadd.f32 %v54, %v62
  %v71 = vadd.f32 %v55, %v63
  %v72 = vadd.f32 %v56, %v64
  %v73 = vadd.f32 %v57, %v65
  %v74 = vadd.f32 %v58, %v66
  %v75 = vadd.f32 %v59, %v67
  %v76 = vadd.f32 %v60, %v68
  %v77 = vadd.f32 %v61, %v69
  %v78 = vadd.f32 %v70, 1e-08
  %v79 = vadd.f32 %v71, 1e-08
  %v80 = vadd.f32 %v72, 1e-08
  %v81 = vadd.f32 %v73, 1e-08
  %v82 = vadd.f32 %v74, 1e-08
  %v83 = vadd.f32 %v75, 1e-08
  %v84 = vadd.f32 %v76, 1e-08
  %v85 = vadd.f32 %v77, 1e-08
  %s86 = ssub.s32 1152, %s35
  %v87 = vstv %s86
  %vm88 = vcmp.lt.s32.totalorder %v27, %v87
  %vm89 = vcmp.lt.s32.totalorder %v28, %v87
  %vm90 = vcmp.lt.s32.totalorder %v29, %v87
  %vm91 = vcmp.lt.s32.totalorder %v30, %v87
  %vm92 = vcmp.lt.s32.totalorder %v31, %v87
  %vm93 = vcmp.lt.s32.totalorder %v32, %v87
  %vm94 = vcmp.lt.s32.totalorder %v33, %v87
  %vm95 = vcmp.lt.s32.totalorder %v34, %v87
  %v96 = vsel %vm88, %v78, 0.0
  %v97 = vsel %vm89, %v79, 0.0
  %v98 = vsel %vm90, %v80, 0.0
  %v99 = vsel %vm91, %v81, 0.0
  %v100 = vsel %vm92, %v82, 0.0
  %v101 = vsel %vm93, %v83, 0.0
  %v102 = vsel %vm94, %v84, 0.0
  %v103 = vsel %vm95, %v85, 0.0
  %v104 = vrsqrt.pop %v96
  %v105 = vmul.f32 %v96, %v104
  %vm106 = vcmp.eq.f32.partialorder %v96, inf
  %v107 = vsel %vm106, %v96, %v105
  %vm108 = vcmp.eq.f32.partialorder %v96, 0.0
  %v109 = vand.u32 %v96, 2147483648
  %v110 = vsel %vm108, %v109, %v107
  %v111 = vrsqrt.pop %v97
  %v112 = vmul.f32 %v97, %v111
  %vm113 = vcmp.eq.f32.partialorder %v97, inf
  %v114 = vsel %vm113, %v97, %v112
  %vm115 = vcmp.eq.f32.partialorder %v97, 0.0
  %v116 = vand.u32 %v97, 2147483648
  %v117 = vsel %vm115, %v116, %v114
  %v118 = vrsqrt.pop %v98
  %v119 = vmul.f32 %v98, %v118
  %vm120 = vcmp.eq.f32.partialorder %v98, inf
  %v121 = vsel %vm120, %v98, %v119
  %vm122 = vcmp.eq.f32.partialorder %v98, 0.0
  %v123 = vand.u32 %v98, 2147483648
  %v124 = vsel %vm122, %v123, %v121
  %v125 = vrsqrt.pop %v99
  %v126 = vmul.f32 %v99, %v125
  %vm127 = vcmp.eq.f32.partialorder %v99, inf
  %v128 = vsel %vm127, %v99, %v126
  %vm129 = vcmp.eq.f32.partialorder %v99, 0.0
  %v130 = vand.u32 %v99, 2147483648
  %v131 = vsel %vm129, %v130, %v128
  %v132 = vrsqrt.pop %v100
  %v133 = vmul.f32 %v100, %v132
  %vm134 = vcmp.eq.f32.partialorder %v100, inf
  %v135 = vsel %vm134, %v100, %v133
  %vm136 = vcmp.eq.f32.partialorder %v100, 0.0
  %v137 = vand.u32 %v100, 2147483648
  %v138 = vsel %vm136, %v137, %v135
  %v139 = vrsqrt.pop %v101
  %v140 = vmul.f32 %v101, %v139
  %vm141 = vcmp.eq.f32.partialorder %v101, inf
  %v142 = vsel %vm141, %v101, %v140
  %vm143 = vcmp.eq.f32.partialorder %v101, 0.0
  %v144 = vand.u32 %v101, 2147483648
  %v145 = vsel %vm143, %v144, %v142
  %v146 = vrsqrt.pop %v102
  %v147 = vmul.f32 %v102, %v146
  %vm148 = vcmp.eq.f32.partialorder %v102, inf
  %v149 = vsel %vm148, %v102, %v147
  %vm150 = vcmp.eq.f32.partialorder %v102, 0.0
  %v151 = vand.u32 %v102, 2147483648
  %v152 = vsel %vm150, %v151, %v149
  %v153 = vrsqrt.pop %v103
  %v154 = vmul.f32 %v103, %v153
  %vm155 = vcmp.eq.f32.partialorder %v103, inf
  %v156 = vsel %vm155, %v103, %v154
  %vm157 = vcmp.eq.f32.partialorder %v103, 0.0
  %v158 = vand.u32 %v103, 2147483648
  %v159 = vsel %vm157, %v158, %v156
  %v160 = vadd.f32 %v96, %v97
  %v161 = vadd.f32 %v160, %v98
  %v162 = vadd.f32 %v161, %v99
  %v163 = vadd.f32 %v162, %v100
  %v164 = vadd.f32 %v163, %v101
  %v165 = vadd.f32 %v164, %v102
  %v166 = vadd.f32 %v165, %v103
  %v167 = vadd.f32 %v166, 0.0
  %v168 = vmul.f32 %v96, %v110
  %v169 = vmul.f32 %v97, %v117
  %v170 = vmul.f32 %v98, %v124
  %v171 = vmul.f32 %v99, %v131
  %v172 = vmul.f32 %v100, %v138
  %v173 = vmul.f32 %v101, %v145
  %v174 = vmul.f32 %v102, %v152
  %v175 = vmul.f32 %v103, %v159
  %v176 = vadd.f32 %v168, %v169
  %v177 = vadd.f32 %v176, %v170
  %v178 = vadd.f32 %v177, %v171
  %v179 = vadd.f32 %v178, %v172
  %v180 = vadd.f32 %v179, %v173
  %v181 = vadd.f32 %v180, %v174
  %v182 = vadd.f32 %v181, %v175
  %v183 = vadd.f32 %v182, 0.0
  %v184 = vsel %vm88, %v110, inf
  %v185 = vsel %vm89, %v117, inf
  %v186 = vsel %vm90, %v124, inf
  %v187 = vsel %vm91, %v131, inf
  %v188 = vsel %vm92, %v138, inf
  %v189 = vsel %vm93, %v145, inf
  %v190 = vsel %vm94, %v152, inf
  %v191 = vsel %vm95, %v159, inf
  %v192 = vmin.f32 %v184, %v185
  %v193 = vmin.f32 %v192, %v186
  %v194 = vmin.f32 %v193, %v187
  %v195 = vmin.f32 %v194, %v188
  %v196 = vmin.f32 %v195, %v189
  %v197 = vmin.f32 %v196, %v190
  %v198 = vmin.f32 %v197, %v191
  %v199 = vmax.f32 %v110, %v117
  %v200 = vmax.f32 %v199, %v124
  %v201 = vmax.f32 %v200, %v131
  %v202 = vmax.f32 %v201, %v138
  %v203 = vmax.f32 %v202, %v145
  %v204 = vmax.f32 %v203, %v152
  %v205 = vmax.f32 %v204, %v159
  %v206 = vmax.f32 %v205, 0.0
  %207 = vst [vmem:[%s1] sm:$0xff] %v167
  %208 = vst [vmem:[%s1 + $0x8] sm:$0xff] %v183
  %209 = vst [vmem:[%s1 + $0x10] sm:$0xff] %v198
  %210 = vst [vmem:[%s1 + $0x18] sm:$0xff] %v206
  // Predicated region
  $region6: #{focal_loss.1} parent=0 // pred_check
    _
  $region7: #{focal_loss.1} parent=0 // pred_check_branch
    %212 = sbr.rel (0) target = $region9
  $region8: #{focal_loss.1} parent=0 // pred_region
    _
  $region9: #{focal_loss.1} parent=0 // pred_fallthru
    _
  // Predicated region
  $region10: #{focal_loss.1} parent=0 // pred_check
    _
  $region11: #{focal_loss.1} parent=0 // pred_check_branch
    %214 = sbr.rel (0) target = $region13
  $region12: #{focal_loss.1} parent=0 // pred_region
    _
  $region13: #{focal_loss.1} parent=0 // pred_fallthru
    _

</llo_original>
